<compile_context>
chip_gen: v7x
topology: tpu7x:2x2x1
jax: 0.10.0
libtpu: 0.0.40
codegen_flags: <defaults>
</compile_context>

<pallas_src>
import jax
import jax.numpy as jnp
from jax.experimental import pallas as pl
from jax.experimental.pallas import tpu as pltpu


def _state_updater_kernel(x_ref, v_ref, o_ref):
    # Elementwise add on the VPU over the whole VMEM tile (bandwidth bound).
    o_ref[...] = x_ref[...] + v_ref[...]


def state_updater(x, v, *, lane=1024, target_tile_bytes=2 * 1024 * 1024):
    """out = x + v via a lane-dense, large-tile Pallas kernel.

    Works for any shape/dtype; x and v must match.
    """
    assert x.shape == v.shape and x.dtype == v.dtype
    orig_shape = x.shape
    dtype = x.dtype
    itemsize = jnp.dtype(dtype).itemsize

    # Flatten to a 1D stream and view it as a lane-dense [rows, lane] slab.
    xf = x.reshape(-1)
    vf = v.reshape(-1)
    n_elems = xf.shape[0]

    rows_total = pl.cdiv(n_elems, lane)

    # Tile rows: target ~target_tile_bytes per tile, multiple of 8 sublanes,
    # clamped so tiny inputs become a single block.
    tile_rows_cap = max(8, ((target_tile_bytes // (lane * itemsize)) // 8) * 8)
    rows_total_up8 = ((rows_total + 7) // 8) * 8
    tile_rows = min(tile_rows_cap, rows_total_up8)

    # Pad the flat stream so it reshapes into a whole number of tiles.
    rows_padded = pl.cdiv(rows_total, tile_rows) * tile_rows
    n_padded = rows_padded * lane
    if n_padded != n_elems:
        pad = n_padded - n_elems
        xf = jnp.pad(xf, (0, pad))
        vf = jnp.pad(vf, (0, pad))

    x2 = xf.reshape(rows_padded, lane)
    v2 = vf.reshape(rows_padded, lane)

    grid = (rows_padded // tile_rows,)
    spec = pl.BlockSpec((tile_rows, lane), lambda i: (i, 0))

    out2 = pl.pallas_call(
        _state_updater_kernel,
        out_shape=jax.ShapeDtypeStruct((rows_padded, lane), dtype),
        grid=grid,
        in_specs=[spec, spec],
        out_specs=spec,
        compiler_params=pltpu.CompilerParams(
            dimension_semantics=("parallel",),
            vmem_limit_bytes=32 * 1024 * 1024,
        ),
    )(x2, v2)

    # Drop the padding (static slice) and restore the caller's shape.
    return out2.reshape(-1)[:n_elems].reshape(orig_shape)


if __name__ == "__main__":
    key = jax.random.PRNGKey(0)
    kx, kv, kx2, kv2 = jax.random.split(key, 4)

    # Small SchNet-like shapes: 16 atoms, 128 hidden features.
    n_atoms, hidden = 16, 128
    x = jax.random.normal(kx, (n_atoms, hidden), dtype=jnp.float32)
    v = jax.random.normal(kv, (n_atoms, hidden), dtype=jnp.float32)

    out = state_updater(x, v)
    out = jax.block_until_ready(out)
    assert out.shape == x.shape and out.dtype == x.dtype
    assert jnp.allclose(out, x + v, atol=1e-6), "mismatch vs reference"

    # Exercise the non-divisible / padded path with a small odd shape.
    x2 = jax.random.normal(kx2, (50, 160), dtype=jnp.float32)
    v2 = jax.random.normal(kv2, (50, 160), dtype=jnp.float32)
    out2 = jax.block_until_ready(state_updater(x2, v2))
    assert jnp.allclose(out2, x2 + v2, atol=1e-6), "mismatch vs reference (padded path)"

    print("KERNEL_OK")
</pallas_src>

<mosaic_0001>
module attributes {stable_mosaic.version = 11 : i64} {
  func.func @_state_updater_kernel(%arg0: i32, %arg1: memref<8x1024xf32, #tpu.memory_space<vmem>>, %arg2: memref<8x1024xf32, #tpu.memory_space<vmem>>, %arg3: memref<8x1024xf32, #tpu.memory_space<vmem>>) attributes {dimension_semantics = [#tpu.dimension_semantics<parallel>], iteration_bounds = array<i64: 1>, scalar_prefetch = 0 : i64, scratch_operands = 0 : i64, tpu.core_type = #tpu.core_type<tc>, window_params = [{transform_indices = @transform_0, window_bounds = array<i64: 8, 1024>}, {transform_indices = @transform_1, window_bounds = array<i64: 8, 1024>}, {transform_indices = @transform_2, window_bounds = array<i64: 8, 1024>}]} {
    %c0 = arith.constant 0 : index
    %c0_0 = arith.constant 0 : index
    %0 = vector.load %arg1[%c0, %c0_0] : memref<8x1024xf32, #tpu.memory_space<vmem>>, vector<8x1024xf32>
    %c0_1 = arith.constant 0 : index
    %c0_2 = arith.constant 0 : index
    %1 = vector.load %arg2[%c0_1, %c0_2] : memref<8x1024xf32, #tpu.memory_space<vmem>>, vector<8x1024xf32>
    %2 = arith.addf %0, %1 : vector<8x1024xf32>
    %c0_3 = arith.constant 0 : index
    %c0_4 = arith.constant 0 : index
    %3 = vector.load %arg3[%c0_3, %c0_4] : memref<8x1024xf32, #tpu.memory_space<vmem>>, vector<8x1024xf32>
    tpu.vector_store %arg3[%c0_3, %c0_4], %2 {strides = array<i32>} : memref<8x1024xf32, #tpu.memory_space<vmem>>, vector<8x1024xf32>,
    return
  }
  func.func @transform_0(%arg0: i32) -> (i32, i32) {
    %c0_i32 = arith.constant 0 : i32
    %c0_i32_0 = arith.constant 0 : i32
    return %arg0, %c0_i32 : i32, i32
  }
  func.func @transform_1(%arg0: i32) -> (i32, i32) {
    %c0_i32 = arith.constant 0 : i32
    %c0_i32_0 = arith.constant 0 : i32
    return %arg0, %c0_i32 : i32, i32
  }
  func.func @transform_2(%arg0: i32) -> (i32, i32) {
    %c0_i32 = arith.constant 0 : i32
    %c0_i32_0 = arith.constant 0 : i32
    return %arg0, %c0_i32 : i32, i32
  }
}

</mosaic_0001>

<llo_original>
// kernel: tpu_custom_call.1
$region0: #{tpu_custom_call.1}
  #allocation0 [shape = 'u32[]', space=smem, size = 0x4, offset = 0x4, fixed_abs, tag = 'smem constant byte address 0x4 - core index']
  #allocation1 [shape = 'u32[144,128]{1,0:T(1,128)}', space=vmem, size = 0x12000, scoped, tag = 'internal scratch']
  %s0 = inlined_call_operand.hbm [shape: f32[8,1024], index: 0, kind: input, shape index: {}]
  %s1 = inlined_call_operand.hbm [shape: f32[8,1024], index: 1, kind: input, shape index: {}]
  %s2 = inlined_call_operand.hbm [shape: f32[8,1024], index: 2, kind: output, shape index: {}]
  %s3 = sld [smem:[#allocation0]]
  $region26: #{tpu_custom_call.1} parent=0
    _
  %s5 = ssub.s32 1, %s3
  %s6 = scalar_select 0, %s5, %s3
  $region1: #{tpu_custom_call.1} parent=0
    #allocation2 [shape = 'u8[32768]{0}', space=vmem, size = 0x8000, scoped, tag = 'input window, operand 0, single buffered']
    #allocation3 [shape = 's32[1]{0}', space=sflag, size = 0x4, scoped, tag = 'scoped memory for tpu_custom_call.1']
    #allocation4 [shape = 's32[1]{0}', space=sflag, size = 0x4, scoped, tag = 'scoped memory for tpu_custom_call.1']
    #allocation5 [shape = 'u8[32768]{0}', space=vmem, size = 0x8000, scoped, tag = 'input window, operand 1, single buffered']
    #allocation6 [shape = 's32[1]{0}', space=sflag, size = 0x4, scoped, tag = 'scoped memory for tpu_custom_call.1']
    #allocation7 [shape = 'u8[32768]{0}', space=vmem, size = 0x8000, scoped, tag = 'output window, operand 0, single buffered']
    %7 = vsyncpa [#allocation3], 0
    %8 = vsyncpa [#allocation6], 0
    %9 = vsyncpa [#allocation4], 0
    // Predicated region
    $region2: #{tpu_custom_call.1} parent=1 // pred_check
      _
    $region3: #{tpu_custom_call.1} parent=1 // pred_check_branch
      %11 = sbr.rel (0) target = $region5
    $region4: #{tpu_custom_call.1} parent=1 // pred_region
      %s13 = ssub.s32 1024, 1024
      %14 = vsyncadd [#allocation3], %s13
      %s16 = sshll.u32 [#allocation2], 4
      %s17 = int_to_ptr.vmem [resolvable:$true] %s16
      %19 = dma.hbm_to_vmem [thread:$0]  %s0, 1024, %s17, [#allocation3]
    $region5: #{tpu_custom_call.1} parent=1 // pred_fallthru
      _
    // Predicated region
    $region6: #{tpu_custom_call.1} parent=1 // pred_check
      _
    $region7: #{tpu_custom_call.1} parent=1 // pred_check_branch
      %21 = sbr.rel (0) target = $region9
    $region8: #{tpu_custom_call.1} parent=1 // pred_region
      %s23 = ssub.s32 1024, 1024
      %24 = vsyncadd [#allocation6], %s23
      %s26 = sshll.u32 [#allocation5], 4
      %s27 = int_to_ptr.vmem [resolvable:$true] %s26
      %29 = dma.hbm_to_vmem [thread:$0]  %s1, 1024, %s27, [#allocation6]
    $region9: #{tpu_custom_call.1} parent=1 // pred_fallthru
      _
    // Predicated region
    $region10: #{tpu_custom_call.1} parent=1 // pred_check
      _
    $region11: #{tpu_custom_call.1} parent=1 // pred_check_branch
      %31 = sbr.rel (0) target = $region13
    $region12: #{tpu_custom_call.1} parent=1 // pred_region
      %32 = dma.done [#allocation3], 1024
    $region13: #{tpu_custom_call.1} parent=1 // pred_fallthru
      _
    // Predicated region
    $region14: #{tpu_custom_call.1} parent=1 // pred_check
      _
    $region15: #{tpu_custom_call.1} parent=1 // pred_check_branch
      %34 = sbr.rel (0) target = $region17
    $region16: #{tpu_custom_call.1} parent=1 // pred_region
      %35 = dma.done [#allocation6], 1024
    $region17: #{tpu_custom_call.1} parent=1 // pred_fallthru
      _
    %v36 = vld [vmem:[#allocation2] sm:$0xff]
    %v37 = vld [vmem:[#allocation2 + $0x8] sm:$0xff]
    %v38 = vld [vmem:[#allocation2 + $0x10] sm:$0xff]
    %v39 = vld [vmem:[#allocation2 + $0x18] sm:$0xff]
    %v40 = vld [vmem:[#allocation2 + $0x20] sm:$0xff]
    %v41 = vld [vmem:[#allocation2 + $0x28] sm:$0xff]
    %v42 = vld [vmem:[#allocation2 + $0x30] sm:$0xff]
    %v43 = vld [vmem:[#allocation2 + $0x38] sm:$0xff]
    %v44 = vld [vmem:[#allocation5] sm:$0xff]
    %v45 = vld [vmem:[#allocation5 + $0x8] sm:$0xff]
    %v46 = vld [vmem:[#allocation5 + $0x10] sm:$0xff]
    %v47 = vld [vmem:[#allocation5 + $0x18] sm:$0xff]
    %v48 = vld [vmem:[#allocation5 + $0x20] sm:$0xff]
    %v49 = vld [vmem:[#allocation5 + $0x28] sm:$0xff]
    %v50 = vld [vmem:[#allocation5 + $0x30] sm:$0xff]
    %v51 = vld [vmem:[#allocation5 + $0x38] sm:$0xff]
    %v52 = vadd.f32 %v36, %v44
    %v53 = vadd.f32 %v37, %v45
    %v54 = vadd.f32 %v38, %v46
    %v55 = vadd.f32 %v39, %v47
    %v56 = vadd.f32 %v40, %v48
    %v57 = vadd.f32 %v41, %v49
    %v58 = vadd.f32 %v42, %v50
    %v59 = vadd.f32 %v43, %v51
    %60 = vst [vmem:[#allocation7] sm:$0xff] %v52
    %61 = vst [vmem:[#allocation7 + $0x8] sm:$0xff] %v53
    %62 = vst [vmem:[#allocation7 + $0x10] sm:$0xff] %v54
    %63 = vst [vmem:[#allocation7 + $0x18] sm:$0xff] %v55
    %64 = vst [vmem:[#allocation7 + $0x20] sm:$0xff] %v56
    %65 = vst [vmem:[#allocation7 + $0x28] sm:$0xff] %v57
    %66 = vst [vmem:[#allocation7 + $0x30] sm:$0xff] %v58
    %67 = vst [vmem:[#allocation7 + $0x38] sm:$0xff] %v59
    // Predicated region
    $region18: #{tpu_custom_call.1} parent=1 // pred_check
      _
    $region19: #{tpu_custom_call.1} parent=1 // pred_check_branch
      %69 = sbr.rel (0) target = $region21
    $region20: #{tpu_custom_call.1} parent=1 // pred_region
      %s71 = ssub.s32 1024, 1024
      %72 = vsyncadd [#allocation4], %s71
      %s74 = sshll.u32 [#allocation7], 4
      %s75 = int_to_ptr.vmem [resolvable:$true] %s74
      %77 = dma.vmem_to_hbm [thread:$0]  %s75, 1024, %s2, [#allocation4]
    $region21: #{tpu_custom_call.1} parent=1 // pred_fallthru
      _
    // Predicated region
    $region22: #{tpu_custom_call.1} parent=1 // pred_check
      _
    $region23: #{tpu_custom_call.1} parent=1 // pred_check_branch
      %79 = sbr.rel (0) target = $region25
    $region24: #{tpu_custom_call.1} parent=1 // pred_region
      %80 = dma.done [#allocation4], 1024
    $region25: #{tpu_custom_call.1} parent=1 // pred_fallthru
      _
    %81 = vsyncpa [#allocation3], 1
    %82 = vsyncpa [#allocation6], 1
    %83 = vsyncpa [#allocation4], 1

</llo_original>
